<compile_context>
chip_gen: v7x
topology: tpu7x:2x2x1
jax: 0.10.0
libtpu: 0.0.40
codegen_flags: <defaults>
</compile_context>

<pallas_src>
import functools

import jax
import jax.numpy as jnp
from jax.experimental import pallas as pl
from jax.experimental.pallas import tpu as pltpu

KSIZE = 3  # conv kernel width (pad=1, stride=1 -> same length out)


def _exit_wrapper_kernel(x_ref, w1_ref, b1_ref, w2_ref, b2_ref,
                         mprev_ref, mnext_ref, y_ref, exit_ref, *, tb, t):
    # x_ref:    (TB, Cin_pad, T)  TB batch elements (channels on sublanes, T on lanes)
    # w1_ref:   (Cout, K*Cin_pad) conv taps fused into a single contraction
    # b1_ref:   (Cout, 1)
    # w2_ref:   (Cout, NCpad)     1x1-conv weight, transposed + zero-padded to 128 lanes
    # b2_ref:   (1, NCpad)
    # mprev/mnext: (1, TB*T)      per-segment edge masks (0 at t==0 / t==T-1 of each seg)
    # y_ref:    (TB, Cout, T)     wrapped_block output (lane-dense along T)
    # exit_ref: (TB, NCpad)       padded exit-branch logits, one lane-dense tile
    L = tb * t

    # Fold TB batch elements onto the lane axis: (Cin_pad, TB*T).
    # Each fragment is T lanes wide -> 128-aligned placement when T % 128 == 0.
    xcat = jnp.concatenate([x_ref[b] for b in range(tb)], axis=-1)

    # conv1d(k=3, pad=1) taps via static cyclic shifts + edge masks.
    # Masks zero both the true sequence edges and the cross-batch-segment leakage.
    x_prev = jnp.roll(xcat, 1, axis=1) * mprev_ref[...]    # x[:, t-1], 0 at seg start
    x_next = jnp.roll(xcat, -1, axis=1) * mnext_ref[...]   # x[:, t+1], 0 at seg end

    # Sublane-aligned tap stack (Cin_pad % 8 == 0) + ONE fused MXU matmul (f32 acc).
    xk = jnp.concatenate([x_prev, xcat, x_next], axis=0)   # (3*Cin_pad, TB*T)
    acc = jnp.dot(w1_ref[...], xk,
                  preferred_element_type=jnp.float32)      # (Cout, TB*T)
    y = jnp.maximum(acc + b1_ref[...], 0.0)                # bias + ReLU (VPU, f32)

    # Per-batch stores (128-aligned lane slices) + exit branch on the f32 y.
    rows = []
    for b in range(tb):
        y_b = y[:, b * t:(b + 1) * t]                      # (Cout, T)
        y_ref[b] = y_b.astype(y_ref.dtype)
        pooled_b = jnp.mean(y_b, axis=1, keepdims=True)    # AdaptiveAvgPool1d(1): (Cout,1)
        row = jnp.sum(pooled_b * w2_ref[...], axis=0, keepdims=True) + b2_ref[...]
        rows.append(row)                                   # (1, NCpad)
    exit_ref[...] = jnp.concatenate(rows, axis=0).astype(exit_ref.dtype)


def exit_wrapper_block(x_ncw, w1, b1, w2, b2, *, batch_block=8):
    """x_ncw: (B, Cin, T) float32 (PyTorch NCW) — used as-is, no transpose.
    w1: (Cout, Cin, K) torch Conv1d weight;  b1: (Cout,)
    w2: (NC, Cout) 1x1-conv/linear weight;   b2: (NC,)
    Returns (y_ncw: (B, Cout, T), exit_result: (B, NC))."""
    B, Cin, T = x_ncw.shape
    Cout, _, K = w1.shape
    assert K == KSIZE
    NC = w2.shape[0]

    # Batch-block size: full batch if small, else a multiple of 8 so the exit-logit
    # output block (TB, NCpad) stays tile-conformant (unmasked stores).
    TB = B if B <= batch_block else max(8, (batch_block // 8) * 8)
    nb = pl.cdiv(B, TB)
    B_pad = nb * TB
    Cin_pad = 8 * pl.cdiv(Cin, 8)            # 8-aligned tap fragments on sublanes
    NCpad = 128 * pl.cdiv(NC, 128)           # lane-aligned exit store
    L = TB * T

    # Glue: pad x (batch + channels); only tiny weight tensors get re-laid-out.
    x_p = jnp.pad(x_ncw, ((0, B_pad - B), (0, Cin_pad - Cin), (0, 0)))
    w1_f = jnp.pad(jnp.transpose(w1, (0, 2, 1)),                      # (Cout, K, Cin)
                   ((0, 0), (0, 0), (0, Cin_pad - Cin))
                   ).reshape(Cout, KSIZE * Cin_pad)                   # (Cout, K*Cin_pad)
    b1_c = b1.reshape(Cout, 1)
    w2_t = jnp.pad(jnp.transpose(w2), ((0, 0), (0, NCpad - NC)))      # (Cout, NCpad)
    b2_r = jnp.pad(b2.reshape(1, NC), ((0, 0), (0, NCpad - NC)))      # (1, NCpad)

    # Per-segment edge masks, built once on the host side (no per-step iota/selects).
    lane_mod = jnp.arange(L, dtype=jnp.int32) % T
    mprev = (lane_mod != 0).astype(x_ncw.dtype).reshape(1, L)
    mnext = (lane_mod != T - 1).astype(x_ncw.dtype).reshape(1, L)

    kernel = functools.partial(_exit_wrapper_kernel, tb=TB, t=T)

    y_pad, exit_pad = pl.pallas_call(
        kernel,
        out_shape=(
            jax.ShapeDtypeStruct((B_pad, Cout, T), x_ncw.dtype),
            jax.ShapeDtypeStruct((B_pad, NCpad), x_ncw.dtype),
        ),
        grid_spec=pltpu.PrefetchScalarGridSpec(
            num_scalar_prefetch=0,
            grid=(nb,),
            in_specs=[
                pl.BlockSpec((TB, Cin_pad, T), lambda i: (i, 0, 0)),
                pl.BlockSpec((Cout, KSIZE * Cin_pad), lambda i: (0, 0)),
                pl.BlockSpec((Cout, 1), lambda i: (0, 0)),
                pl.BlockSpec((Cout, NCpad), lambda i: (0, 0)),
                pl.BlockSpec((1, NCpad), lambda i: (0, 0)),
                pl.BlockSpec((1, L), lambda i: (0, 0)),
                pl.BlockSpec((1, L), lambda i: (0, 0)),
            ],
            out_specs=[
                pl.BlockSpec((TB, Cout, T), lambda i: (i, 0, 0)),
                pl.BlockSpec((TB, NCpad), lambda i: (i, 0)),
            ],
        ),
        compiler_params=pltpu.CompilerParams(
            dimension_semantics=("parallel",)),   # megacore over batch blocks on v7x
    )(x_p, w1_f, b1_c, w2_t, b2_r, mprev, mnext)

    # Drop batch / channel / lane padding; torch.squeeze on (B, NC, 1) -> (B, NC).
    return y_pad[:B], exit_pad[:B, :NC]


def _reference(x_ncw, w1, b1, w2, b2):
    # pure-JAX reference (torch Conv1d k=3 pad=1 + ReLU + AdaptiveAvgPool1d(1) + 1x1 conv)
    B, Cin, T = x_ncw.shape
    xp = jnp.pad(x_ncw, ((0, 0), (0, 0), (1, 1)))
    y = sum(jnp.einsum('bct,oc->bot', xp[:, :, k:k + T], w1[:, :, k])
            for k in range(KSIZE)) + b1[None, :, None]
    y = jnp.maximum(y, 0.0)
    pooled = jnp.mean(y, axis=2)                            # (B, Cout)
    logits = pooled @ w2.T + b2[None, :]
    return y, logits


if __name__ == "__main__":
    Cin, Cout, T, NC = 4, 8, 128, 5
    key = jax.random.PRNGKey(0)
    kx, k1, k2, k3, k4, kx2 = jax.random.split(key, 6)

    w1 = 0.1 * jax.random.normal(k1, (Cout, Cin, KSIZE), dtype=jnp.float32)
    b1 = 0.1 * jax.random.normal(k2, (Cout,), dtype=jnp.float32)
    w2 = 0.1 * jax.random.normal(k3, (NC, Cout), dtype=jnp.float32)
    b2 = 0.1 * jax.random.normal(k4, (NC,), dtype=jnp.float32)

    # Case 1: small batch (single grid step, whole batch folded onto the lane axis).
    B = 2
    x = jax.random.normal(kx, (B, Cin, T), dtype=jnp.float32)
    y_ref, exit_ref = _reference(x, w1, b1, w2, b2)
    y, exit_res = exit_wrapper_block(x, w1, b1, w2, b2)
    jax.block_until_ready((y, exit_res))
    assert y.shape == (B, Cout, T) and exit_res.shape == (B, NC)
    assert jnp.allclose(y, y_ref, atol=1e-4, rtol=1e-4), "wrapped_block mismatch (B=2)"
    assert jnp.allclose(exit_res, exit_ref, atol=1e-4, rtol=1e-4), "exit branch mismatch (B=2)"

    # Case 2: larger batch exercising batch padding + a multi-step grid (TB=8, nb=2).
    B2 = 10
    x2 = jax.random.normal(kx2, (B2, Cin, T), dtype=jnp.float32)
    y2_ref, exit2_ref = _reference(x2, w1, b1, w2, b2)
    y2, exit2 = exit_wrapper_block(x2, w1, b1, w2, b2, batch_block=8)
    jax.block_until_ready((y2, exit2))
    assert y2.shape == (B2, Cout, T) and exit2.shape == (B2, NC)
    assert jnp.allclose(y2, y2_ref, atol=1e-4, rtol=1e-4), "wrapped_block mismatch (B=10)"
    assert jnp.allclose(exit2, exit2_ref, atol=1e-4, rtol=1e-4), "exit branch mismatch (B=10)"

    print("KERNEL_OK")
</pallas_src>

<mosaic_0001>
module attributes {stable_mosaic.version = 11 : i64} {
  func.func @_exit_wrapper_kernel(%arg0: i32, %arg1: memref<2x8x128xf32, #tpu.memory_space<vmem>>, %arg2: memref<8x24xf32, #tpu.memory_space<vmem>>, %arg3: memref<8x1xf32, #tpu.memory_space<vmem>>, %arg4: memref<8x128xf32, #tpu.memory_space<vmem>>, %arg5: memref<1x128xf32, #tpu.memory_space<vmem>>, %arg6: memref<1x256xf32, #tpu.memory_space<vmem>>, %arg7: memref<1x256xf32, #tpu.memory_space<vmem>>, %arg8: memref<2x8x128xf32, #tpu.memory_space<vmem>>, %arg9: memref<2x128xf32, #tpu.memory_space<vmem>>) attributes {dimension_semantics = [#tpu.dimension_semantics<parallel>], iteration_bounds = array<i64: 1>, scalar_prefetch = 0 : i64, scratch_operands = 0 : i64, tpu.core_type = #tpu.core_type<tc>, window_params = [{transform_indices = @transform_0, window_bounds = array<i64: 2, 8, 128>}, {pipeline_mode = #tpu.pipeline_mode<synchronous>, transform_indices = @transform_1, window_bounds = array<i64: 8, 24>}, {pipeline_mode = #tpu.pipeline_mode<synchronous>, transform_indices = @transform_2, window_bounds = array<i64: 8, 1>}, {pipeline_mode = #tpu.pipeline_mode<synchronous>, transform_indices = @transform_3, window_bounds = array<i64: 8, 128>}, {pipeline_mode = #tpu.pipeline_mode<synchronous>, transform_indices = @transform_4, window_bounds = array<i64: 1, 128>}, {pipeline_mode = #tpu.pipeline_mode<synchronous>, transform_indices = @transform_5, window_bounds = array<i64: 1, 256>}, {pipeline_mode = #tpu.pipeline_mode<synchronous>, transform_indices = @transform_6, window_bounds = array<i64: 1, 256>}, {transform_indices = @transform_7, window_bounds = array<i64: 2, 8, 128>}, {transform_indices = @transform_8, window_bounds = array<i64: 2, 128>}]} {
    %c0 = arith.constant 0 : index
    %c0_0 = arith.constant 0 : index
    %c0_1 = arith.constant 0 : index
    %0 = vector.load %arg1[%c0, %c0_0, %c0_1] : memref<2x8x128xf32, #tpu.memory_space<vmem>>, vector<1x8x128xf32>
    %1 = vector.shape_cast %0 : vector<1x8x128xf32> to vector<8x128xf32>
    %c1 = arith.constant 1 : index
    %c0_2 = arith.constant 0 : index
    %c0_3 = arith.constant 0 : index
    %2 = vector.load %arg1[%c1, %c0_2, %c0_3] : memref<2x8x128xf32, #tpu.memory_space<vmem>>, vector<1x8x128xf32>
    %3 = vector.shape_cast %2 : vector<1x8x128xf32> to vector<8x128xf32>
    %4 = tpu.concatenate %1, %3 in 1 : vector<8x128xf32>, vector<8x128xf32> -> vector<8x256xf32>
    %5 = vector.extract_strided_slice %4 {offsets = [0, 255], sizes = [8, 1], strides = [1, 1]} : vector<8x256xf32> to vector<8x1xf32>
    %6 = vector.extract_strided_slice %4 {offsets = [0, 0], sizes = [8, 255], strides = [1, 1]} : vector<8x256xf32> to vector<8x255xf32>
    %7 = tpu.concatenate %5, %6 in 1 : vector<8x1xf32>, vector<8x255xf32> -> vector<8x256xf32>
    %c0_4 = arith.constant 0 : index
    %c0_5 = arith.constant 0 : index
    %8 = vector.load %arg6[%c0_4, %c0_5] : memref<1x256xf32, #tpu.memory_space<vmem>>, vector<1x256xf32>
    %9 = vector.broadcast %8 : vector<1x256xf32> to vector<8x256xf32>
    %10 = arith.mulf %7, %9 : vector<8x256xf32>
    %11 = vector.extract_strided_slice %4 {offsets = [0, 1], sizes = [8, 255], strides = [1, 1]} : vector<8x256xf32> to vector<8x255xf32>
    %12 = vector.extract_strided_slice %4 {offsets = [0, 0], sizes = [8, 1], strides = [1, 1]} : vector<8x256xf32> to vector<8x1xf32>
    %13 = tpu.concatenate %11, %12 in 1 : vector<8x255xf32>, vector<8x1xf32> -> vector<8x256xf32>
    %c0_6 = arith.constant 0 : index
    %c0_7 = arith.constant 0 : index
    %14 = vector.load %arg7[%c0_6, %c0_7] : memref<1x256xf32, #tpu.memory_space<vmem>>, vector<1x256xf32>
    %15 = vector.broadcast %14 : vector<1x256xf32> to vector<8x256xf32>
    %16 = arith.mulf %13, %15 : vector<8x256xf32>
    %17 = tpu.concatenate %10, %4, %16 in 0 : vector<8x256xf32>, vector<8x256xf32>, vector<8x256xf32> -> vector<24x256xf32>
    %c0_8 = arith.constant 0 : index
    %c0_9 = arith.constant 0 : index
    %18 = vector.load %arg2[%c0_8, %c0_9] : memref<8x24xf32, #tpu.memory_space<vmem>>, vector<8x24xf32>
    %cst = arith.constant dense<0.000000e+00> : vector<8x256xf32>
    %19 = tpu.matmul %18, %17, %cst {dimension_numbers = #tpu.dot_dimension_numbers<[1], [0], [0], [1], [0, 0, 1, 1], [], []>} : vector<8x24xf32>, vector<24x256xf32>, vector<8x256xf32> -> vector<8x256xf32>
    %c0_10 = arith.constant 0 : index
    %c0_11 = arith.constant 0 : index
    %20 = vector.load %arg3[%c0_10, %c0_11] : memref<8x1xf32, #tpu.memory_space<vmem>>, vector<8x1xf32>
    %21 = vector.broadcast %20 : vector<8x1xf32> to vector<8x256xf32>
    %22 = arith.addf %19, %21 : vector<8x256xf32>
    %cst_12 = arith.constant 0.000000e+00 : f32
    %23 = vector.broadcast %cst_12 : f32 to vector<8x256xf32>
    %24 = arith.maximumf %22, %23 : vector<8x256xf32>
    %25 = vector.extract_strided_slice %24 {offsets = [0, 0], sizes = [8, 128], strides = [1, 1]} : vector<8x256xf32> to vector<8x128xf32>
    %c0_13 = arith.constant 0 : index
    %c0_14 = arith.constant 0 : index
    %c0_15 = arith.constant 0 : index
    %26 = vector.load %arg8[%c0_13, %c0_14, %c0_15] : memref<2x8x128xf32, #tpu.memory_space<vmem>>, vector<1x8x128xf32>
    %27 = vector.shape_cast %26 : vector<1x8x128xf32> to vector<8x128xf32>
    %28 = vector.shape_cast %25 : vector<8x128xf32> to vector<1x8x128xf32>
    tpu.vector_store %arg8[%c0_13, %c0_14, %c0_15], %28 {strides = array<i32>} : memref<2x8x128xf32, #tpu.memory_space<vmem>>, vector<1x8x128xf32>,
    %cst_16 = arith.constant dense<0.000000e+00> : vector<8xf32>
    %29 = vector.multi_reduction <add>, %25, %cst_16 [1] : vector<8x128xf32> to vector<8xf32>
    %30 = vector.shape_cast %29 : vector<8xf32> to vector<8x1xf32>
    %cst_17 = arith.constant 1.280000e+02 : f32
    %31 = vector.broadcast %cst_17 : f32 to vector<8x1xf32>
    %32 = arith.divf %30, %31 : vector<8x1xf32>
    %c0_18 = arith.constant 0 : index
    %c0_19 = arith.constant 0 : index
    %33 = vector.load %arg4[%c0_18, %c0_19] : memref<8x128xf32, #tpu.memory_space<vmem>>, vector<8x128xf32>
    %34 = vector.broadcast %32 : vector<8x1xf32> to vector<8x128xf32>
    %35 = arith.mulf %34, %33 : vector<8x128xf32>
    %cst_20 = arith.constant dense<0.000000e+00> : vector<128xf32>
    %36 = vector.multi_reduction <add>, %35, %cst_20 [0] : vector<8x128xf32> to vector<128xf32>
    %37 = vector.shape_cast %36 : vector<128xf32> to vector<1x128xf32>
    %c0_21 = arith.constant 0 : index
    %c0_22 = arith.constant 0 : index
    %38 = vector.load %arg5[%c0_21, %c0_22] : memref<1x128xf32, #tpu.memory_space<vmem>>, vector<1x128xf32>
    %39 = arith.addf %37, %38 : vector<1x128xf32>
    %40 = vector.extract_strided_slice %24 {offsets = [0, 128], sizes = [8, 128], strides = [1, 1]} : vector<8x256xf32> to vector<8x128xf32>
    %c1_23 = arith.constant 1 : index
    %c0_24 = arith.constant 0 : index
    %c0_25 = arith.constant 0 : index
    %41 = vector.load %arg8[%c1_23, %c0_24, %c0_25] : memref<2x8x128xf32, #tpu.memory_space<vmem>>, vector<1x8x128xf32>
    %42 = vector.shape_cast %41 : vector<1x8x128xf32> to vector<8x128xf32>
    %43 = vector.shape_cast %40 : vector<8x128xf32> to vector<1x8x128xf32>
    tpu.vector_store %arg8[%c1_23, %c0_24, %c0_25], %43 {strides = array<i32>} : memref<2x8x128xf32, #tpu.memory_space<vmem>>, vector<1x8x128xf32>,
    %cst_26 = arith.constant dense<0.000000e+00> : vector<8xf32>
    %44 = vector.multi_reduction <add>, %40, %cst_26 [1] : vector<8x128xf32> to vector<8xf32>
    %45 = vector.shape_cast %44 : vector<8xf32> to vector<8x1xf32>
    %cst_27 = arith.constant 1.280000e+02 : f32
    %46 = vector.broadcast %cst_27 : f32 to vector<8x1xf32>
    %47 = arith.divf %45, %46 : vector<8x1xf32>
    %c0_28 = arith.constant 0 : index
    %c0_29 = arith.constant 0 : index
    %48 = vector.load %arg4[%c0_28, %c0_29] : memref<8x128xf32, #tpu.memory_space<vmem>>, vector<8x128xf32>
    %49 = vector.broadcast %47 : vector<8x1xf32> to vector<8x128xf32>
    %50 = arith.mulf %49, %48 : vector<8x128xf32>
    %cst_30 = arith.constant dense<0.000000e+00> : vector<128xf32>
    %51 = vector.multi_reduction <add>, %50, %cst_30 [0] : vector<8x128xf32> to vector<128xf32>
    %52 = vector.shape_cast %51 : vector<128xf32> to vector<1x128xf32>
    %c0_31 = arith.constant 0 : index
    %c0_32 = arith.constant 0 : index
    %53 = vector.load %arg5[%c0_31, %c0_32] : memref<1x128xf32, #tpu.memory_space<vmem>>, vector<1x128xf32>
    %54 = arith.addf %52, %53 : vector<1x128xf32>
    %55 = tpu.concatenate %39, %54 in 0 : vector<1x128xf32>, vector<1x128xf32> -> vector<2x128xf32>
    %c0_33 = arith.constant 0 : index
    %c0_34 = arith.constant 0 : index
    %56 = vector.load %arg9[%c0_33, %c0_34] : memref<2x128xf32, #tpu.memory_space<vmem>>, vector<2x128xf32>
    tpu.vector_store %arg9[%c0_33, %c0_34], %55 {strides = array<i32>} : memref<2x128xf32, #tpu.memory_space<vmem>>, vector<2x128xf32>,
    return
  }
  func.func @transform_0(%arg0: i32) -> (i32, i32, i32) {
    %c0_i32 = arith.constant 0 : i32
    %c0_i32_0 = arith.constant 0 : i32
    %c0_i32_1 = arith.constant 0 : i32
    return %arg0, %c0_i32, %c0_i32_0 : i32, i32, i32
  }
  func.func @transform_1(%arg0: i32) -> (i32, i32) {
    %c0_i32 = arith.constant 0 : i32
    %c0_i32_0 = arith.constant 0 : i32
    %c0_i32_1 = arith.constant 0 : i32
    return %c0_i32, %c0_i32_0 : i32, i32
  }
  func.func @transform_2(%arg0: i32) -> (i32, i32) {
    %c0_i32 = arith.constant 0 : i32
    %c0_i32_0 = arith.constant 0 : i32
    %c0_i32_1 = arith.constant 0 : i32
    return %c0_i32, %c0_i32_0 : i32, i32
  }
  func.func @transform_3(%arg0: i32) -> (i32, i32) {
    %c0_i32 = arith.constant 0 : i32
    %c0_i32_0 = arith.constant 0 : i32
    %c0_i32_1 = arith.constant 0 : i32
    return %c0_i32, %c0_i32_0 : i32, i32
  }
  func.func @transform_4(%arg0: i32) -> (i32, i32) {
    %c0_i32 = arith.constant 0 : i32
    %c0_i32_0 = arith.constant 0 : i32
    %c0_i32_1 = arith.constant 0 : i32
    return %c0_i32, %c0_i32_0 : i32, i32
  }
  func.func @transform_5(%arg0: i32) -> (i32, i32) {
    %c0_i32 = arith.constant 0 : i32
    %c0_i32_0 = arith.constant 0 : i32
    %c0_i32_1 = arith.constant 0 : i32
    return %c0_i32, %c0_i32_0 : i32, i32
  }
  func.func @transform_6(%arg0: i32) -> (i32, i32) {
    %c0_i32 = arith.constant 0 : i32
    %c0_i32_0 = arith.constant 0 : i32
    %c0_i32_1 = arith.constant 0 : i32
    return %c0_i32, %c0_i32_0 : i32, i32
  }
  func.func @transform_7(%arg0: i32) -> (i32, i32, i32) {
    %c0_i32 = arith.constant 0 : i32
    %c0_i32_0 = arith.constant 0 : i32
    %c0_i32_1 = arith.constant 0 : i32
    return %arg0, %c0_i32, %c0_i32_0 : i32, i32, i32
  }
  func.func @transform_8(%arg0: i32) -> (i32, i32) {
    %c0_i32 = arith.constant 0 : i32
    %c0_i32_0 = arith.constant 0 : i32
    return %arg0, %c0_i32 : i32, i32
  }
}

</mosaic_0001>

<llo_original>
// kernel: tpu_custom_call.1
$region0: #{tpu_custom_call.1}
  #allocation0 [shape = 'u32[]', space=smem, size = 0x4, offset = 0x4, fixed_abs, tag = 'smem constant byte address 0x4 - core index']
  #allocation1 [shape = 'u32[144,128]{1,0:T(1,128)}', space=vmem, size = 0x12000, scoped, tag = 'internal scratch']
  %s0 = inlined_call_operand.hbm [shape: f32[2,8,128], index: 0, kind: input, shape index: {}]
  %s1 = inlined_call_operand.vmem [shape: f32[8,24], index: 1, kind: input, shape index: {}]
  %s2 = inlined_call_operand.vmem [shape: f32[8,1], index: 2, kind: input, shape index: {}]
  %s3 = inlined_call_operand.vmem [shape: f32[8,128], index: 3, kind: input, shape index: {}]
  %s4 = inlined_call_operand.vmem [shape: f32[1,128], index: 4, kind: input, shape index: {}]
  %s5 = inlined_call_operand.vmem [shape: f32[1,256], index: 5, kind: input, shape index: {}]
  %s6 = inlined_call_operand.vmem [shape: f32[1,256], index: 6, kind: input, shape index: {}]
  %s7 = inlined_call_operand.hbm [shape: f32[2,8,128], index: 7, kind: output, shape index: {0}]
  %s8 = inlined_call_operand.hbm [shape: f32[2,128], index: 8, kind: output, shape index: {1}]
  %9 = xla_tuple %s7, %s8
  %s10 = sld [smem:[#allocation0]]
  $region50: #{tpu_custom_call.1} parent=0
    _
  %s12 = ssub.s32 1, %s10
  %s13 = scalar_select 0, %s12, %s10
  $region1: #{tpu_custom_call.1} parent=0
    #allocation2 [shape = 'u8[8192]{0}', space=vmem, size = 0x2000, scoped, tag = 'input window, operand 0, single buffered']
    #allocation3 [shape = 's32[1]{0}', space=sflag, size = 0x4, scoped, tag = 'scoped memory for tpu_custom_call.1']
    #allocation4 [shape = 's32[1]{0}', space=sflag, size = 0x4, scoped, tag = 'scoped memory for tpu_custom_call.1']
    #allocation5 [shape = 'u8[8192]{0}', space=vmem, size = 0x2000, scoped, tag = 'output window, operand 0, single buffered']
    #allocation6 [shape = 'u8[1024]{0}', space=vmem, size = 0x400, scoped, tag = 'output window, operand 1, single buffered']
    #allocation7 [shape = 's32[1]{0}', space=sflag, size = 0x4, scoped, tag = 'scoped memory for tpu_custom_call.1']
    %14 = vsyncpa [#allocation3], 0
    %15 = vsyncpa [#allocation4], 0
    %16 = vsyncpa [#allocation7], 0
    // Predicated region
    $region2: #{tpu_custom_call.1} parent=1 // pred_check
      _
    $region3: #{tpu_custom_call.1} parent=1 // pred_check_branch
      %18 = sbr.rel (0) target = $region5
    $region4: #{tpu_custom_call.1} parent=1 // pred_region
      %s20 = ssub.s32 256, 256
      %21 = vsyncadd [#allocation3], %s20
      %s22 = sshll.u32 [#allocation2], 4
      %s23 = int_to_ptr.vmem [resolvable:$true] %s22
      %28 = dma.hbm_to_vmem [thread:$0]  %s0, 256, %s23, [#allocation3], 128, 128, 8
    $region5: #{tpu_custom_call.1} parent=1 // pred_fallthru
      _
    // Predicated region
    $region6: #{tpu_custom_call.1} parent=1 // pred_check
      _
    $region7: #{tpu_custom_call.1} parent=1 // pred_check_branch
      %30 = sbr.rel (0) target = $region9
    $region8: #{tpu_custom_call.1} parent=1 // pred_region
      _
    $region9: #{tpu_custom_call.1} parent=1 // pred_fallthru
      _
    // Predicated region
    $region10: #{tpu_custom_call.1} parent=1 // pred_check
      _
    $region11: #{tpu_custom_call.1} parent=1 // pred_check_branch
      %32 = sbr.rel (0) target = $region13
    $region12: #{tpu_custom_call.1} parent=1 // pred_region
      _
    $region13: #{tpu_custom_call.1} parent=1 // pred_fallthru
      _
    // Predicated region
    $region14: #{tpu_custom_call.1} parent=1 // pred_check
      _
    $region15: #{tpu_custom_call.1} parent=1 // pred_check_branch
      %34 = sbr.rel (0) target = $region17
    $region16: #{tpu_custom_call.1} parent=1 // pred_region
      _
    $region17: #{tpu_custom_call.1} parent=1 // pred_fallthru
      _
    // Predicated region
    $region18: #{tpu_custom_call.1} parent=1 // pred_check
      _
    $region19: #{tpu_custom_call.1} parent=1 // pred_check_branch
      %36 = sbr.rel (0) target = $region21
    $region20: #{tpu_custom_call.1} parent=1 // pred_region
      _
    $region21: #{tpu_custom_call.1} parent=1 // pred_fallthru
      _
    // Predicated region
    $region22: #{tpu_custom_call.1} parent=1 // pred_check
      _
    $region23: #{tpu_custom_call.1} parent=1 // pred_check_branch
      %38 = sbr.rel (0) target = $region25
    $region24: #{tpu_custom_call.1} parent=1 // pred_region
      _
    $region25: #{tpu_custom_call.1} parent=1 // pred_fallthru
      _
    // Predicated region
    $region26: #{tpu_custom_call.1} parent=1 // pred_check
      _
    $region27: #{tpu_custom_call.1} parent=1 // pred_check_branch
      %40 = sbr.rel (0) target = $region29
    $region28: #{tpu_custom_call.1} parent=1 // pred_region
      _
    $region29: #{tpu_custom_call.1} parent=1 // pred_fallthru
      _
    // Predicated region
    $region30: #{tpu_custom_call.1} parent=1 // pred_check
      _
    $region31: #{tpu_custom_call.1} parent=1 // pred_check_branch
      %42 = sbr.rel (0) target = $region33
    $region32: #{tpu_custom_call.1} parent=1 // pred_region
      %43 = dma.done [#allocation3], 256
    $region33: #{tpu_custom_call.1} parent=1 // pred_fallthru
      _
    %v44 = vld [vmem:[#allocation2] sm:$0xff]
    %s45 = scalar_lea.vmem [#allocation2], 8
    %v46 = vld [vmem:[%s45] sm:$0xff]
    %48 = vrot.lane.b32.xlu0 %v46, 1
    %v49 = vpop.permute.xlu0 %48
    %52 = vrot.lane.b32.xlu0 %v44, 1
    %v53 = vpop.permute.xlu0 %52
    %vm54 = vcmask 7168
    %v55 = vsel %vm54, %v53, %v49
    %v58 = vsel %vm54, %v49, %v53
    %v59 = vld [vmem:[%s5] sm:$0x3]
    %v61 = vlaneseq
    %v62 = vshrl.u32 %v61, 7
    %v63 = vsub.s32 0, %v62
    %v64 = vrot.slane %v59, %v63
    %v65 = vlaneseq
    %v66 = vshrl.u32 %v65, 7
    %v67 = vsub.s32 1, %v66
    %v68 = vrot.slane %v59, %v67
    %v71 = vmul.f32 %v58, %v64
    %v72 = vmul.f32 %v55, %v68
    %73 = vrot.lane.b32.xlu0 %v44, 127
    %v74 = vpop.permute.xlu0 %73
    %75 = vrot.lane.b32.xlu0 %v46, 127
    %v76 = vpop.permute.xlu0 %75
    %vm77 = vcmask 1039360
    %v78 = vsel %vm77, %v74, %v76
    %v82 = vsel %vm77, %v76, %v74
    %v83 = vld [vmem:[%s6] sm:$0x3]
    %v85 = vlaneseq
    %v86 = vshrl.u32 %v85, 7
    %v87 = vsub.s32 0, %v86
    %v88 = vrot.slane %v83, %v87
    %v89 = vlaneseq
    %v90 = vshrl.u32 %v89, 7
    %v91 = vsub.s32 1, %v90
    %v92 = vrot.slane %v83, %v91
    %v95 = vmul.f32 %v78, %v88
    %v96 = vmul.f32 %v82, %v92
    %v97 = vld [vmem:[%s1] sm:$0xff]
    %v98 = vld [vmem:[%s2] sm:$0xff]
    %100 = vset.pattern.permute.xlu0 0
    %101 = vperm.xlu0 %100, %v98
    %v102 = vpop.permute.xlu0 %101
    %vm104 = vcmask 195584
    %v106 = vsel %vm104, %v97, 0
    %108 = vmatprep.subr.mxu0 %v72
    %109 = vmatpush1.msra.mxu0 %v71
    %110 = vmatprep.subr.mxu0 %v46
    %111 = vmatpush1.msra.mxu0 %v44
    %112 = vmatprep.subr.mxu0 %v96
    %113 = vmatpush1.msra.mxu0 %v95
    %114 = vmatprep.subr.mxu0 0.0
    %115 = vmatpush1.msra.mxu0 0.0
    %116 = vmatprep.subr.mxu0 0.0
    %117 = vmatpush1.msra.mxu0 0.0
    %118 = vmatprep.subr.mxu0 0.0
    %119 = vmatpush1.msra.mxu0 0.0
    %120 = vmatprep.subr.mxu0 0.0
    %121 = vmatpush1.msra.mxu0 0.0
    %122 = vmatprep.subr.mxu0 0.0
    %123 = vmatpush1.msra.mxu0 0.0
    %124 = vmatprep.subr.mxu0 0.0
    %125 = vmatpush1.msra.mxu0 0.0
    %126 = vmatprep.subr.mxu0 0.0
    %127 = vmatpush1.msra.mxu0 0.0
    %128 = vmatprep.subr.mxu0 0.0
    %129 = vmatpush1.msra.mxu0 0.0
    %130 = vmatprep.subr.mxu0 0.0
    %131 = vmatpush1.msra.mxu0 0.0
    %132 = vmatprep.subr.mxu0 0.0
    %133 = vmatpush1.msra.mxu0 0.0
    %134 = vmatprep.subr.mxu0 0.0
    %135 = vmatpush1.msra.mxu0 0.0
    %136 = vmatprep.subr.mxu0 0.0
    %137 = vmatpush1.msra.mxu0 0.0
    %138 = vmatprep.subr.mxu0 0.0
    %139 = vmatpush1.msra.mxu0 0.0
    %140 = vmatprep.subr.mxu0 0.0
    %141 = vmatpush1.msra.mxu0 0.0
    %142 = vmatprep.subr.mxu0 0.0
    %143 = vmatpush1.msra.mxu0 0.0
    %144 = vmatprep.subr.mxu0 0.0
    %145 = vmatpush1.msra.mxu0 0.0
    %146 = vmatprep.subr.mxu0 0.0
    %147 = vmatpush1.msra.mxu0 0.0
    %148 = vmatprep.subr.mxu0 0.0
    %149 = vmatpush1.msra.mxu0 0.0
    %150 = vmatprep.subr.mxu0 0.0
    %151 = vmatpush1.msra.mxu0 0.0
    %152 = vmatprep.subr.mxu0 0.0
    %153 = vmatpush1.msra.mxu0 0.0
    %154 = vmatprep.subr.mxu0 0.0
    %155 = vmatpush1.msra.mxu0 0.0
    %156 = vmatprep.subr.mxu0 0.0
    %157 = vmatpush1.msra.mxu0 0.0
    %158 = vmatprep.subr.mxu0 0.0
    %159 = vmatpush1.msra.mxu0 0.0
    %160 = vmatprep.subr.mxu0 0.0
    %161 = vmatpush1.msra.mxu0 0.0
    %162 = vmatprep.subr.mxu0 0.0
    %163 = vmatpush1.msra.mxu0 0.0
    %164 = vmatprep.subr.mxu0 0.0
    %165 = vmatpush1.msra.mxu0 0.0
    %166 = vmatprep.subr.mxu0 0.0
    %167 = vmatpush1.msra.mxu0 0.0
    %168 = vmatprep.subr.mxu0 0.0
    %169 = vmatpush1.msra.mxu0 0.0
    %170 = vmatprep.subr.mxu0 0.0
    %171 = vmatpush1.msra.mxu0 0.0
    %172 = vmatprep.mubr.f32.mxu0 0.0
    %173 = vmatmul.mubr.f32.gmra.mrb[0].mxu0 %v106
    %v174 = vpop.f32.mrb[0].mxu0
    %v175 = vadd.f32 %v102, %v174
    %v176 = vpop.f32.mrb[0].mxu0
    %v177 = vadd.f32 %v102, %v176
    %178 = vdwg.mxu0
    %v179 = vmax.f32 %v175, 0.0
    %v180 = vmax.f32 %v177, 0.0
    %181 = vst [vmem:[#allocation5] sm:$0xff] %v179
    %182 = vadd.xlane.f32.xlu0 %v179
    %v183 = vpop.xlane.xlu0 %182
    %v184 = vrcp.pop 128.0
    %v185 = vmul.f32 %v183, %v184
    %v186 = vld [vmem:[%s3] sm:$0xff]
    %v187 = vmul.f32 %v185, %v186
    %v188 = vrot.slane %v187, 4
    %v189 = vadd.f32 %v187, %v188
    %v190 = vrot.slane %v189, 2
    %v191 = vadd.f32 %v189, %v190
    %v192 = vrot.slane %v191, 1
    %v193 = vadd.f32 %v191, %v192
    %v194 = vld [vmem:[%s4] sm:$0x1]
    %v195 = vadd.f32 %v193, %v194
    %s196 = scalar_lea.vmem [#allocation5], 8
    %197 = vst [vmem:[%s196] sm:$0xff] %v180
    %198 = vadd.xlane.f32.xlu0 %v180
    %v199 = vpop.xlane.xlu0 %198
    %v200 = vmul.f32 %v199, %v184
    %v201 = vld [vmem:[%s3] sm:$0xff]
    %v202 = vmul.f32 %v200, %v201
    %v203 = vrot.slane %v202, 4
    %v204 = vadd.f32 %v202, %v203
    %v205 = vrot.slane %v204, 2
    %v206 = vadd.f32 %v204, %v205
    %v207 = vrot.slane %v206, 1
    %v208 = vadd.f32 %v206, %v207
    %v209 = vld [vmem:[%s4] sm:$0x1]
    %v210 = vadd.f32 %v208, %v209
    %v212 = vrot.slane %v210, 7
    %vm214 = vcmask 1040384
    %v215 = vsel %vm214, %v195, %v212
    %216 = vst [vmem:[#allocation6] sm:$0x3] %v215
    // Predicated region
    $region34: #{tpu_custom_call.1} parent=1 // pred_check
      _
    $region35: #{tpu_custom_call.1} parent=1 // pred_check_branch
      %218 = sbr.rel (0) target = $region37
    $region36: #{tpu_custom_call.1} parent=1 // pred_region
      %s220 = ssub.s32 256, 256
      %221 = vsyncadd [#allocation4], %s220
      %s222 = sshll.u32 [#allocation5], 4
      %s223 = int_to_ptr.vmem [resolvable:$true] %s222
      %228 = dma.vmem_to_hbm [thread:$0]  %s223, 256, %s7, [#allocation4], 128, 128, 8
    $region37: #{tpu_custom_call.1} parent=1 // pred_fallthru
      _
    // Predicated region
    $region38: #{tpu_custom_call.1} parent=1 // pred_check
      _
    $region39: #{tpu_custom_call.1} parent=1 // pred_check_branch
      %230 = sbr.rel (0) target = $region41
    $region40: #{tpu_custom_call.1} parent=1 // pred_region
      %s232 = ssub.s32 32, 32
      %233 = vsyncadd [#allocation7], %s232
      %s235 = sshll.u32 [#allocation6], 4
      %s236 = int_to_ptr.vmem [resolvable:$true] %s235
      %238 = dma.vmem_to_hbm [thread:$0]  %s236, 32, %s8, [#allocation7]
    $region41: #{tpu_custom_call.1} parent=1 // pred_fallthru
      _
    // Predicated region
    $region42: #{tpu_custom_call.1} parent=1 // pred_check
      _
    $region43: #{tpu_custom_call.1} parent=1 // pred_check_branch
      %240 = sbr.rel (0) target = $region45
    $region44: #{tpu_custom_call.1} parent=1 // pred_region
      %241 = dma.done [#allocation4], 256
    $region45: #{tpu_custom_call.1} parent=1 // pred_fallthru
      _
    // Predicated region
    $region46: #{tpu_custom_call.1} parent=1 // pred_check
      _
    $region47: #{tpu_custom_call.1} parent=1 // pred_check_branch
      %243 = sbr.rel (0) target = $region49
    $region48: #{tpu_custom_call.1} parent=1 // pred_region
      %244 = dma.done [#allocation7], 32
    $region49: #{tpu_custom_call.1} parent=1 // pred_fallthru
      _
    %245 = vsyncpa [#allocation3], 1
    %246 = vsyncpa [#allocation4], 1
    %247 = vsyncpa [#allocation7], 1

</llo_original>
